<compile_context>
chip_gen: v7x
topology: tpu7x:2x2x1
jax: 0.10.0
libtpu: 0.0.40
codegen_flags: <defaults>
</compile_context>

<pallas_src>
import jax
import jax.numpy as jnp
from jax.experimental import pallas as pl
from jax.experimental.pallas import tpu as pltpu

_EPS = 1e-5  # nn.BatchNorm1d default

# Generation-safe VMEM budgets: v7x has only 64 MiB physical VMEM per
# TensorCore (128 MiB on v5e/v6e), so cap the resident working set at ~36 MiB
# and raise the scoped limit to 48 MiB (>=16 MiB headroom everywhere; v5e's
# scoped default is only 16 MiB, hence the explicit vmem_limit_bytes).
_VMEM_LIMIT_BYTES = 48 * 1024 * 1024
_DEFAULT_WORKING_SET_BYTES = 36 * 1024 * 1024


def _channel_granularity(itemsize):
    # Sub-32-bit dtypes pack along sublanes (bf16 vreg is [16,128]): keep the
    # channel tile in multiples of the packed sublane count.
    if itemsize >= 4:
        return 8
    if itemsize == 2:
        return 16
    return 32


def _working_set_per_channel_bytes(N, L, itemsize):
    # Per grid step: 2x double-buffered input + 2x double-buffered output
    # tiles (I/O dtype) + ~2 tile-sized f32 temporaries inside the kernel.
    return N * L * (4 * itemsize + 2 * 4)


def _pick_channel_tile(C, N, L, itemsize, budget_bytes):
    """Channel tile for the fused single-pass kernel, or None if no legal
    tile fits the working-set budget (caller then takes the two-phase path)."""
    per_ch = _working_set_per_channel_bytes(N, L, itemsize)
    g = _channel_granularity(itemsize)
    while g > 8 and C % g != 0:
        g //= 2
    if C % g != 0:
        # C not a multiple of 8: the only legal channel block is the full dim.
        return C if C * per_ch <= budget_bytes else None
    divisors = [d for d in range(g, C + 1, g) if C % d == 0]
    fitting = [d for d in divisors if d * per_ch <= budget_bytes]
    if not fitting:
        return None
    # Prefer >=2 grid steps (v7x megacore sharding of the "parallel" axis),
    # and among those an even step count (no straggler step).
    multi = [d for d in fitting if C // d >= 2]
    if multi:
        even = [d for d in multi if (C // d) % 2 == 0]
        return max(even) if even else max(multi)
    return max(fitting)


def _pick_two_phase_tiles(C, N, L, itemsize, budget_bytes):
    g = _channel_granularity(itemsize)
    while g > 8 and C % g != 0:
        g //= 2
    tc = g if C % g == 0 else C
    per_n = tc * L * (4 * itemsize + 2 * 4)
    fitting = [d for d in range(1, N + 1)
               if N % d == 0 and d * per_n <= budget_bytes]
    tn = max(fitting) if fitting else 1
    return tc, tn


def _make_fused_kernel(tc):
    def kernel(x_ref, gamma_ref, beta_ref, o_ref):
        # x_ref/o_ref: (N, Tc, L); gamma_ref/beta_ref: full (C, 1), resident.
        x = x_ref[...].astype(jnp.float32)
        n, _, l = x_ref.shape
        inv = jnp.float32(1.0 / (n * l))

        # One-pass moments (f32 accumulation): no (x - mean) full-tile temp.
        s1 = jnp.sum(jnp.sum(x, axis=0, keepdims=True), axis=2, keepdims=True)
        s2 = jnp.sum(jnp.sum(x * x, axis=0, keepdims=True),
                     axis=2, keepdims=True)
        mean = s1 * inv                                       # (1, Tc, 1)
        var = jnp.maximum(s2 * inv - mean * mean, 0.0)        # (1, Tc, 1)

        # gamma/beta stay resident across the whole grid; slice this step's
        # channel window straight out of VMEM (no per-step micro-DMA).
        c0 = pl.multiple_of(pl.program_id(0) * tc, tc)
        gamma = gamma_ref[pl.ds(c0, tc), :].astype(jnp.float32)   # (Tc, 1)
        beta = beta_ref[pl.ds(c0, tc), :].astype(jnp.float32)     # (Tc, 1)

        # Fold BN + affine into one per-channel scale/bias -> single FMA pass.
        scale = gamma * jax.lax.rsqrt(var + jnp.float32(_EPS))    # (1, Tc, 1)
        bias = beta - mean * scale                                # (1, Tc, 1)
        o_ref[...] = (x * scale + bias).astype(o_ref.dtype)

    return kernel


def _dial1d_two_phase(x, gamma2d, beta2d, budget_bytes):
    """Fallback when a full (N, L) channel slab does not fit VMEM: pass 1
    accumulates per-channel sum / sum-of-squares over N-chunks and finalizes a
    folded scale/bias; pass 2 streams x again and applies them."""
    N, C, L = x.shape
    itemsize = jnp.dtype(x.dtype).itemsize
    tc, tn = _pick_two_phase_tiles(C, N, L, itemsize, budget_bytes)
    grid = (C // tc, N // tn)
    inv = 1.0 / (N * L)

    def stats_kernel(x_ref, g_ref, b_ref, scale_ref, bias_ref, s1, s2):
        n_idx = pl.program_id(1)

        @pl.when(n_idx == 0)
        def _():
            s1[...] = jnp.zeros_like(s1)
            s2[...] = jnp.zeros_like(s2)

        xx = x_ref[...].astype(jnp.float32)                      # (Tn, Tc, L)
        s1[...] += jnp.sum(jnp.sum(xx, axis=0), axis=-1, keepdims=True)
        s2[...] += jnp.sum(jnp.sum(xx * xx, axis=0), axis=-1, keepdims=True)

        @pl.when(n_idx == pl.num_programs(1) - 1)
        def _():
            mean = s1[...] * jnp.float32(inv)                    # (Tc, 1)
            var = jnp.maximum(s2[...] * jnp.float32(inv) - mean * mean, 0.0)
            scale = g_ref[...].astype(jnp.float32) * jax.lax.rsqrt(
                var + jnp.float32(_EPS))
            scale_ref[...] = scale
            bias_ref[...] = b_ref[...].astype(jnp.float32) - mean * scale

    scale, bias = pl.pallas_call(
        stats_kernel,
        out_shape=(jax.ShapeDtypeStruct((C, 1), jnp.float32),
                   jax.ShapeDtypeStruct((C, 1), jnp.float32)),
        grid=grid,
        in_specs=[
            pl.BlockSpec((tn, tc, L), lambda c, n: (n, c, 0)),
            pl.BlockSpec((tc, 1), lambda c, n: (c, 0)),
            pl.BlockSpec((tc, 1), lambda c, n: (c, 0)),
        ],
        out_specs=(pl.BlockSpec((tc, 1), lambda c, n: (c, 0)),
                   pl.BlockSpec((tc, 1), lambda c, n: (c, 0))),
        scratch_shapes=[pltpu.VMEM((tc, 1), jnp.float32),
                        pltpu.VMEM((tc, 1), jnp.float32)],
        compiler_params=pltpu.CompilerParams(
            dimension_semantics=("parallel", "arbitrary"),
            vmem_limit_bytes=_VMEM_LIMIT_BYTES),
    )(x, gamma2d, beta2d)

    def apply_kernel(x_ref, scale_ref, bias_ref, o_ref):
        xx = x_ref[...].astype(jnp.float32)
        o_ref[...] = (xx * scale_ref[...] + bias_ref[...]).astype(o_ref.dtype)

    return pl.pallas_call(
        apply_kernel,
        out_shape=jax.ShapeDtypeStruct((N, C, L), x.dtype),
        grid=grid,
        in_specs=[
            pl.BlockSpec((tn, tc, L), lambda c, n: (n, c, 0)),
            pl.BlockSpec((tc, 1), lambda c, n: (c, 0)),
            pl.BlockSpec((tc, 1), lambda c, n: (c, 0)),
        ],
        out_specs=pl.BlockSpec((tn, tc, L), lambda c, n: (n, c, 0)),
        compiler_params=pltpu.CompilerParams(
            dimension_semantics=("parallel", "parallel"),
            vmem_limit_bytes=_VMEM_LIMIT_BYTES),
    )(x, scale, bias)


def dial1d_forward(x, gamma, beta, is_source=True, channel_tile=None,
                   working_set_budget_bytes=_DEFAULT_WORKING_SET_BYTES):
    """x: (N, C, L); gamma, beta: (1, C, 1) or (C,).  Returns (N, C, L)."""
    del is_source  # bn_S / bn_T produce identical outputs (affine=False,
                   # training-mode batch stats); only running buffers differ.
    N, C, L = x.shape
    itemsize = jnp.dtype(x.dtype).itemsize
    gamma2d = jnp.reshape(gamma, (C, 1))
    beta2d = jnp.reshape(beta, (C, 1))

    if channel_tile is not None:
        tc = int(channel_tile)
        if C % tc != 0 or not (tc % 8 == 0 or tc == C):
            raise ValueError("channel_tile must divide C and be a multiple of "
                             "8 (or equal to C)")
        if tc * _working_set_per_channel_bytes(N, L, itemsize) > _VMEM_LIMIT_BYTES:
            raise ValueError("explicit channel_tile does not fit the VMEM "
                             "limit; lower it or use automatic tiling")
    else:
        tc = _pick_channel_tile(C, N, L, itemsize, working_set_budget_bytes)

    if tc is None:
        # Even the minimum-width channel slab over the full (N, L) extent does
        # not fit the VMEM budget -> two-phase (stats then apply) path.
        return _dial1d_two_phase(x, gamma2d, beta2d, working_set_budget_bytes)

    grid = (C // tc,)
    # TODO(synk): when L is not a multiple of 128, output stores are masked
    #             (lane-sparse); a pad-to-128 + masked-stats variant would
    #             recover lane density for tiny-L workloads.
    # TODO(synk): pipeline_mode=pl.Buffered(3) on the x spec could further
    #             hide DMA for very small tiles (low value once tiles are big).
    return pl.pallas_call(
        _make_fused_kernel(tc),
        out_shape=jax.ShapeDtypeStruct((N, C, L), x.dtype),
        grid=grid,
        in_specs=[
            pl.BlockSpec((N, tc, L), lambda i: (0, i, 0)),
            pl.BlockSpec((C, 1), lambda i: (0, 0)),   # resident, one DMA total
            pl.BlockSpec((C, 1), lambda i: (0, 0)),
        ],
        out_specs=pl.BlockSpec((N, tc, L), lambda i: (0, i, 0)),
        compiler_params=pltpu.CompilerParams(
            dimension_semantics=("parallel",),
            vmem_limit_bytes=_VMEM_LIMIT_BYTES),
        cost_estimate=pl.CostEstimate(
            flops=5 * N * C * L,
            transcendentals=C,
            bytes_accessed=2 * N * C * L * itemsize + 8 * C),
    )(x, gamma2d, beta2d)


def _reference(x, gamma, beta):
    # Pure-JAX reference of PyTorch training-mode BatchNorm1d + affine.
    x = x.astype(jnp.float32)
    mean = jnp.mean(x, axis=(0, 2), keepdims=True)
    var = jnp.mean((x - mean) ** 2, axis=(0, 2), keepdims=True)
    x_hat = (x - mean) / jnp.sqrt(var + _EPS)
    return gamma * x_hat + beta


if __name__ == "__main__":
    key = jax.random.PRNGKey(0)
    k1, k2, k3, k4, k5, k6 = jax.random.split(key, 6)

    def check(out, x, gamma, beta, tag):
        ref = _reference(x, gamma, beta)
        assert out.shape == x.shape and out.dtype == x.dtype, tag
        assert jnp.allclose(out.astype(jnp.float32), ref,
                            atol=1e-4, rtol=1e-4), f"mismatch: {tag}"

    # 1) Module-scale shape (N, C, L) = (2, 4, 16); DIAL1d.reset_parameters():
    #    gamma ~ U(0, 1), beta = 0.  C < 8 exercises the full-channel block.
    N, C, L = 2, 4, 16
    x = jax.random.normal(k1, (N, C, L), dtype=jnp.float32)
    gamma = jax.random.uniform(k2, (1, C, 1), dtype=jnp.float32)
    beta = jnp.zeros((1, C, 1), dtype=jnp.float32)
    out = jax.block_until_ready(dial1d_forward(x, gamma, beta, is_source=True))
    check(out, x, gamma, beta, "base")

    # 2) Explicit channel tile -> multi-step channel grid (Tc=8, grid=(2,)).
    N2, C2, L2 = 2, 16, 16
    x2 = jax.random.normal(k3, (N2, C2, L2), dtype=jnp.float32)
    gamma2 = jax.random.uniform(k4, (1, C2, 1), dtype=jnp.float32)
    beta2 = jnp.zeros((1, C2, 1), dtype=jnp.float32)
    out2 = jax.block_until_ready(
        dial1d_forward(x2, gamma2, beta2, is_source=False, channel_tile=8))
    check(out2, x2, gamma2, beta2, "tiled")

    # 3) Automatic tiling (prefers >=2 even grid steps for v7x megacore).
    N3, C3, L3 = 4, 64, 128
    x3 = jax.random.normal(k5, (N3, C3, L3), dtype=jnp.float32)
    gamma3 = jax.random.uniform(k6, (1, C3, 1), dtype=jnp.float32)
    beta3 = jnp.zeros((1, C3, 1), dtype=jnp.float32)
    out3 = jax.block_until_ready(dial1d_forward(x3, gamma3, beta3))
    check(out3, x3, gamma3, beta3, "auto")

    # 4) Two-phase fallback (forced via a tiny working-set budget): stats
    #    accumulated over N-chunks, then a second streaming apply pass.
    out4 = jax.block_until_ready(
        dial1d_forward(x3, gamma3, beta3, working_set_budget_bytes=50_000))
    check(out4, x3, gamma3, beta3, "two-phase")

    print("KERNEL_OK")
</pallas_src>

<mosaic_0001>
module attributes {stable_mosaic.version = 11 : i64} {
  func.func @kernel(%arg0: i32, %arg1: memref<2x4x16xf32, #tpu.memory_space<vmem>>, %arg2: memref<4x1xf32, #tpu.memory_space<vmem>>, %arg3: memref<4x1xf32, #tpu.memory_space<vmem>>, %arg4: memref<2x4x16xf32, #tpu.memory_space<vmem>>) attributes {dimension_semantics = [#tpu.dimension_semantics<parallel>], iteration_bounds = array<i64: 1>, scalar_prefetch = 0 : i64, scratch_operands = 0 : i64, tpu.core_type = #tpu.core_type<tc>, window_params = [{transform_indices = @transform_0, window_bounds = array<i64: 2, 4, 16>}, {pipeline_mode = #tpu.pipeline_mode<synchronous>, transform_indices = @transform_1, window_bounds = array<i64: 4, 1>}, {pipeline_mode = #tpu.pipeline_mode<synchronous>, transform_indices = @transform_2, window_bounds = array<i64: 4, 1>}, {transform_indices = @transform_3, window_bounds = array<i64: 2, 4, 16>}]} {
    %c0 = arith.constant 0 : index
    %c0_0 = arith.constant 0 : index
    %c0_1 = arith.constant 0 : index
    %0 = vector.load %arg1[%c0, %c0_0, %c0_1] : memref<2x4x16xf32, #tpu.memory_space<vmem>>, vector<2x4x16xf32>
    %cst = arith.constant dense<0.000000e+00> : vector<4x16xf32>
    %1 = vector.multi_reduction <add>, %0, %cst [0] : vector<2x4x16xf32> to vector<4x16xf32>
    %2 = vector.shape_cast %1 : vector<4x16xf32> to vector<1x4x16xf32>
    %cst_2 = arith.constant dense<0.000000e+00> : vector<1x4xf32>
    %3 = vector.multi_reduction <add>, %2, %cst_2 [2] : vector<1x4x16xf32> to vector<1x4xf32>
    %4 = vector.shape_cast %3 : vector<1x4xf32> to vector<1x4x1xf32>
    %5 = arith.mulf %0, %0 : vector<2x4x16xf32>
    %cst_3 = arith.constant dense<0.000000e+00> : vector<4x16xf32>
    %6 = vector.multi_reduction <add>, %5, %cst_3 [0] : vector<2x4x16xf32> to vector<4x16xf32>
    %7 = vector.shape_cast %6 : vector<4x16xf32> to vector<1x4x16xf32>
    %cst_4 = arith.constant dense<0.000000e+00> : vector<1x4xf32>
    %8 = vector.multi_reduction <add>, %7, %cst_4 [2] : vector<1x4x16xf32> to vector<1x4xf32>
    %9 = vector.shape_cast %8 : vector<1x4xf32> to vector<1x4x1xf32>
    %cst_5 = arith.constant 3.125000e-02 : f32
    %10 = vector.broadcast %cst_5 : f32 to vector<1x4x1xf32>
    %11 = arith.mulf %4, %10 : vector<1x4x1xf32>
    %cst_6 = arith.constant 3.125000e-02 : f32
    %12 = vector.broadcast %cst_6 : f32 to vector<1x4x1xf32>
    %13 = arith.mulf %9, %12 : vector<1x4x1xf32>
    %14 = arith.mulf %11, %11 : vector<1x4x1xf32>
    %15 = arith.subf %13, %14 : vector<1x4x1xf32>
    %cst_7 = arith.constant 0.000000e+00 : f32
    %16 = vector.broadcast %cst_7 : f32 to vector<1x4x1xf32>
    %17 = arith.maximumf %15, %16 : vector<1x4x1xf32>
    %c4_i32 = arith.constant 4 : i32
    %18 = arith.muli %arg0, %c4_i32 : i32
    %19 = tpu.assume_multiple %18, 4 : i32
    %20 = arith.index_cast %19 : i32 to index
    %c0_8 = arith.constant 0 : index
    %21 = vector.load %arg2[%20, %c0_8] : memref<4x1xf32, #tpu.memory_space<vmem>>, vector<4x1xf32>
    %22 = arith.index_cast %19 : i32 to index
    %c0_9 = arith.constant 0 : index
    %23 = vector.load %arg3[%22, %c0_9] : memref<4x1xf32, #tpu.memory_space<vmem>>, vector<4x1xf32>
    %cst_10 = arith.constant 9.99999974E-6 : f32
    %24 = vector.broadcast %cst_10 : f32 to vector<1x4x1xf32>
    %25 = arith.addf %17, %24 : vector<1x4x1xf32>
    %26 = math.rsqrt %25 : vector<1x4x1xf32>
    %27 = vector.shape_cast %21 : vector<4x1xf32> to vector<1x4x1xf32>
    %28 = arith.mulf %27, %26 : vector<1x4x1xf32>
    %29 = arith.mulf %11, %28 : vector<1x4x1xf32>
    %30 = vector.shape_cast %23 : vector<4x1xf32> to vector<1x4x1xf32>
    %31 = arith.subf %30, %29 : vector<1x4x1xf32>
    %32 = vector.broadcast %28 : vector<1x4x1xf32> to vector<2x4x16xf32>
    %33 = arith.mulf %0, %32 : vector<2x4x16xf32>
    %34 = vector.broadcast %31 : vector<1x4x1xf32> to vector<2x4x16xf32>
    %35 = arith.addf %33, %34 : vector<2x4x16xf32>
    %c0_11 = arith.constant 0 : index
    %c0_12 = arith.constant 0 : index
    %c0_13 = arith.constant 0 : index
    %36 = vector.load %arg4[%c0_11, %c0_12, %c0_13] : memref<2x4x16xf32, #tpu.memory_space<vmem>>, vector<2x4x16xf32>
    tpu.vector_store %arg4[%c0_11, %c0_12, %c0_13], %35 {strides = array<i32>} : memref<2x4x16xf32, #tpu.memory_space<vmem>>, vector<2x4x16xf32>,
    return
  }
  func.func @transform_0(%arg0: i32) -> (i32, i32, i32) {
    %c0_i32 = arith.constant 0 : i32
    %c0_i32_0 = arith.constant 0 : i32
    %c0_i32_1 = arith.constant 0 : i32
    return %c0_i32, %arg0, %c0_i32_0 : i32, i32, i32
  }
  func.func @transform_1(%arg0: i32) -> (i32, i32) {
    %c0_i32 = arith.constant 0 : i32
    %c0_i32_0 = arith.constant 0 : i32
    %c0_i32_1 = arith.constant 0 : i32
    return %c0_i32, %c0_i32_0 : i32, i32
  }
  func.func @transform_2(%arg0: i32) -> (i32, i32) {
    %c0_i32 = arith.constant 0 : i32
    %c0_i32_0 = arith.constant 0 : i32
    %c0_i32_1 = arith.constant 0 : i32
    return %c0_i32, %c0_i32_0 : i32, i32
  }
  func.func @transform_3(%arg0: i32) -> (i32, i32, i32) {
    %c0_i32 = arith.constant 0 : i32
    %c0_i32_0 = arith.constant 0 : i32
    %c0_i32_1 = arith.constant 0 : i32
    return %c0_i32, %arg0, %c0_i32_0 : i32, i32, i32
  }
}

</mosaic_0001>

<llo_original>
// kernel: tpu_custom_call.1
$region0: #{tpu_custom_call.1}
  #allocation0 [shape = 'u32[]', space=smem, size = 0x4, offset = 0x4, fixed_abs, tag = 'smem constant byte address 0x4 - core index']
  #allocation1 [shape = 'u32[144,128]{1,0:T(1,128)}', space=vmem, size = 0x12000, scoped, tag = 'internal scratch']
  %s0 = inlined_call_operand.vmem [shape: f32[2,4,16], index: 0, kind: input, shape index: {}]
  %s1 = inlined_call_operand.vmem [shape: f32[4,1], index: 1, kind: input, shape index: {}]
  %s2 = inlined_call_operand.vmem [shape: f32[4,1], index: 2, kind: input, shape index: {}]
  %s3 = inlined_call_operand.hbm [shape: f32[2,4,16], index: 3, kind: output, shape index: {}]
  %s4 = sld [smem:[#allocation0]]
  $region22: #{tpu_custom_call.1} parent=0
    _
  %s6 = ssub.s32 1, %s4
  %s7 = scalar_select 0, %s6, %s4
  $region1: #{tpu_custom_call.1} parent=0
    #allocation2 [shape = 'u8[4096]{0}', space=vmem, size = 0x1000, scoped, tag = 'output window, operand 0, single buffered']
    #allocation3 [shape = 's32[1]{0}', space=sflag, size = 0x4, scoped, tag = 'scoped memory for tpu_custom_call.1']
    %8 = vsyncpa [#allocation3], 0
    // Predicated region
    $region2: #{tpu_custom_call.1} parent=1 // pred_check
      _
    $region3: #{tpu_custom_call.1} parent=1 // pred_check_branch
      %10 = sbr.rel (0) target = $region5
    $region4: #{tpu_custom_call.1} parent=1 // pred_region
      _
    $region5: #{tpu_custom_call.1} parent=1 // pred_fallthru
      _
    // Predicated region
    $region6: #{tpu_custom_call.1} parent=1 // pred_check
      _
    $region7: #{tpu_custom_call.1} parent=1 // pred_check_branch
      %12 = sbr.rel (0) target = $region9
    $region8: #{tpu_custom_call.1} parent=1 // pred_region
      _
    $region9: #{tpu_custom_call.1} parent=1 // pred_fallthru
      _
    // Predicated region
    $region10: #{tpu_custom_call.1} parent=1 // pred_check
      _
    $region11: #{tpu_custom_call.1} parent=1 // pred_check_branch
      %14 = sbr.rel (0) target = $region13
    $region12: #{tpu_custom_call.1} parent=1 // pred_region
      _
    $region13: #{tpu_custom_call.1} parent=1 // pred_fallthru
      _
    %v15 = vld [vmem:[%s0] sm:$0xf]
    %v16 = vld [vmem:[%s0 + $0x4] sm:$0xf]
    %vm17 = vcmask 125952
    %v18 = vsel %vm17, %v15, 0.0
    %v19 = vsel %vm17, %v16, 0.0
    %v20 = vadd.f32 %v18, %v19
    %v21 = vsel %vm17, %v20, 0.0
    %22 = vadd.xlane.f32.xlu0 %v21
    %v23 = vpop.xlane.xlu0 %22
    %v24 = vmul.f32 %v15, %v15
    %v25 = vmul.f32 %v16, %v16
    %v26 = vsel %vm17, %v24, 0.0
    %v27 = vsel %vm17, %v25, 0.0
    %v28 = vadd.f32 %v26, %v27
    %v29 = vsel %vm17, %v28, 0.0
    %30 = vadd.xlane.f32.xlu0 %v29
    %v31 = vpop.xlane.xlu0 %30
    %v32 = vmul.f32 %v23, 0.03125
    %v33 = vmul.f32 %v31, 0.03125
    %v34 = vmul.f32 %v32, %v32
    %v35 = vsub.f32 %v33, %v34
    %v36 = vmax.f32 %v35, 0.0
    %s37 = smul.u32 0, 4
    %s38 = scalar_lea.vmem %s1, %s37
    %v39 = vld [vmem:[%s38] sm:$0xf]
    %s40 = scalar_lea.vmem %s2, %s37
    %v41 = vld [vmem:[%s40] sm:$0xf]
    %v42 = vadd.f32 %v36, 1e-05
    %v43 = vrsqrt.pop %v42
    %v44 = vmul.f32 %v39, %v43
    %v45 = vmul.f32 %v32, %v44
    %v46 = vsub.f32 %v41, %v45
    %48 = vset.pattern.permute.xlu0 0
    %49 = vperm.xlu0 %48, %v44
    %v50 = vpop.permute.xlu0 %49
    %v52 = vmul.f32 %v15, %v50
    %v53 = vmul.f32 %v16, %v50
    %55 = vset.pattern.permute.xlu0 0
    %56 = vperm.xlu0 %55, %v46
    %v57 = vpop.permute.xlu0 %56
    %v59 = vadd.f32 %v52, %v57
    %v60 = vadd.f32 %v53, %v57
    %61 = vst.msk [vmem:[#allocation2] sm:$0xf] %vm17, %v59
    %62 = vst.msk [vmem:[#allocation2 + $0x4] sm:$0xf] %vm17, %v60
    // Predicated region
    $region14: #{tpu_custom_call.1} parent=1 // pred_check
      _
    $region15: #{tpu_custom_call.1} parent=1 // pred_check_branch
      %64 = sbr.rel (0) target = $region17
    $region16: #{tpu_custom_call.1} parent=1 // pred_region
      %s66 = ssub.s32 128, 128
      %67 = vsyncadd [#allocation3], %s66
      %s68 = sshll.u32 [#allocation2], 4
      %s69 = int_to_ptr.vmem [resolvable:$true] %s68
      %74 = dma.vmem_to_hbm [thread:$0]  %s69, 128, %s3, [#allocation3], 64, 64, 4
    $region17: #{tpu_custom_call.1} parent=1 // pred_fallthru
      _
    // Predicated region
    $region18: #{tpu_custom_call.1} parent=1 // pred_check
      _
    $region19: #{tpu_custom_call.1} parent=1 // pred_check_branch
      %76 = sbr.rel (0) target = $region21
    $region20: #{tpu_custom_call.1} parent=1 // pred_region
      %77 = dma.done [#allocation3], 128
    $region21: #{tpu_custom_call.1} parent=1 // pred_fallthru
      _
    %78 = vsyncpa [#allocation3], 1

</llo_original>
